<compile_context>
chip_gen: v7x
topology: tpu7x:2x2x1
jax: 0.10.0
libtpu: 0.0.40
codegen_flags: <defaults>
</compile_context>

<pallas_src>
import functools
from dataclasses import dataclass

import jax
import jax.numpy as jnp
from jax.experimental import pallas as pl
from jax.experimental.pallas import tpu as pltpu


@dataclass(frozen=True)
class DenseConfig:
    hidden: int = 32
    out: int = 32


def _round_up(a: int, m: int) -> int:
    return (a + m - 1) // m * m


def _linear_kernel_single_k(x_ref, w_ref, b_ref, o_ref):
    """Fast path: whole K reduction in one tile.  dot + bias + store, no scratch.

    x_ref: (tm, Kp) bf16   w_ref: (Kp, tn) bf16   b_ref: (1, tn) f32
    o_ref: (tm, tn) f32
    """
    o_ref[...] = (
        jnp.dot(x_ref[...], w_ref[...], preferred_element_type=jnp.float32)
        + b_ref[...]
    ).astype(o_ref.dtype)


def _linear_kernel_multi_k(x_ref, w_ref, b_ref, o_ref, acc_ref):
    """One (tm, tn) output tile, accumulated over the K grid axis.

    x_ref: (tm, tk) bf16   w_ref: (tk, tn) bf16   b_ref: (1, tn) f32
    o_ref: (tm, tn) f32    acc_ref: (tm, tn) f32 VMEM scratch
    """
    k = pl.program_id(2)

    @pl.when(k == 0)
    def _():
        acc_ref[...] = jnp.zeros_like(acc_ref)

    acc_ref[...] += jnp.dot(
        x_ref[...], w_ref[...], preferred_element_type=jnp.float32
    )

    @pl.when(k == pl.num_programs(2) - 1)
    def _():
        # Bias added once, in the epilogue only (keeps the K loop MXU-bound).
        o_ref[...] = (acc_ref[...] + b_ref[...]).astype(o_ref.dtype)


@functools.partial(jax.jit, static_argnames=("tm", "tn", "tk"))
def dense_forward(x, w, b, *, tm: int = 512, tn: int = 512, tk: int = 1024):
    """Pallas forward pass: y = x @ w + b  (f32 output, bf16 MXU inputs).

    x: (M, K), w: (K, N), b: (N,).  K and N are zero-padded to multiples of 128
    (lane-dense tiles, unmasked stores); M is padded to a multiple of 8.  Tiles
    shrink to the padded problem size for small shapes; if K fits in one tile a
    scratch-free single-step kernel is used.
    """
    M, K = x.shape
    Kw, N = w.shape
    assert K == Kw and b.shape == (N,)

    # Padded problem dims and tile sizes (tiles never exceed the padded dims).
    Kp0 = _round_up(K, 128)
    Np0 = _round_up(N, 128)
    Mp0 = _round_up(M, 8)
    tm = min(tm, Mp0)
    tk = min(tk, Kp0)
    tn = min(tn, Np0)
    Mp = _round_up(M, tm)
    Kp = _round_up(K, tk)
    Np = _round_up(N, tn)

    # bf16 MXU inputs; bias stays f32 for the epilogue add.  Zero padding is
    # exact for a matmul (extra K rows/cols contribute 0, extra M/N sliced off).
    xp = jnp.pad(x.astype(jnp.bfloat16), ((0, Mp - M), (0, Kp - K)))
    wp = jnp.pad(w.astype(jnp.bfloat16), ((0, Kp - K), (0, Np - N)))
    bp = jnp.pad(b.astype(jnp.float32), ((0, Np - N),)).reshape(1, Np)

    # Advisory cost estimate for XLA scheduling around the custom call.
    cost = pl.CostEstimate(
        flops=2 * Mp * Np * Kp,
        transcendentals=0,
        bytes_accessed=xp.size * 2 + wp.size * 2 + bp.size * 4 + Mp * Np * 4,
    )
    out_shape = jax.ShapeDtypeStruct((Mp, Np), jnp.float32)

    n_k_steps = Kp // tk
    if n_k_steps == 1:
        # Fast path: single K step, no accumulator scratch, 2-D parallel grid.
        yp = pl.pallas_call(
            _linear_kernel_single_k,
            out_shape=out_shape,
            grid=(Mp // tm, Np // tn),
            in_specs=[
                pl.BlockSpec((tm, Kp), lambda i, j: (i, 0)),   # x tile
                pl.BlockSpec((Kp, tn), lambda i, j: (0, j)),   # w tile
                pl.BlockSpec((1, tn), lambda i, j: (0, j)),    # bias tile
            ],
            out_specs=pl.BlockSpec((tm, tn), lambda i, j: (i, j)),
            compiler_params=pltpu.CompilerParams(
                dimension_semantics=("parallel", "parallel"),
                vmem_limit_bytes=32 * 1024 * 1024,
            ),
            cost_estimate=cost,
        )(xp, wp, bp)
    else:
        yp = pl.pallas_call(
            _linear_kernel_multi_k,
            out_shape=out_shape,
            grid=(Mp // tm, Np // tn, n_k_steps),
            in_specs=[
                pl.BlockSpec((tm, tk), lambda i, j, k: (i, k)),  # x tile
                pl.BlockSpec((tk, tn), lambda i, j, k: (k, j)),  # w tile
                pl.BlockSpec((1, tn), lambda i, j, k: (0, j)),   # bias tile
            ],
            out_specs=pl.BlockSpec((tm, tn), lambda i, j, k: (i, j)),
            scratch_shapes=[pltpu.VMEM((tm, tn), jnp.float32)],
            compiler_params=pltpu.CompilerParams(
                dimension_semantics=("parallel", "parallel", "arbitrary"),
                vmem_limit_bytes=32 * 1024 * 1024,
            ),
            cost_estimate=cost,
        )(xp, wp, bp)

    return yp[:M, :N]


class DenseModule:
    """Minimal concrete realization of BaseModule's contract in JAX/Pallas.

    __init__(config) stores config and calls build(); forward() runs the
    Pallas kernel (mirrors the nn.Module + abc structure without torch).
    """

    def __init__(self, config: DenseConfig):
        self.config = config
        self.build()

    def build(self) -> None:
        # Deterministic parameter init (stand-in for nn.Linear init).
        key = jax.random.PRNGKey(0)
        kw, kb = jax.random.split(key)
        H, O = self.config.hidden, self.config.out
        limit = 1.0 / jnp.sqrt(jnp.float32(H))
        # Weights stored (in, out); cast to bf16 once here (MXU-native width).
        self.w = jax.random.uniform(kw, (H, O), jnp.float32, -limit, limit).astype(
            jnp.bfloat16
        )
        self.b = jax.random.uniform(kb, (O,), jnp.float32, -limit, limit)

    def forward(self, x):
        return dense_forward(x, self.w, self.b)

    # TODO(synk): load_weights/save_weights omitted (file I/O, no kernel work).


if __name__ == "__main__":
    cfg = DenseConfig(hidden=32, out=32)
    mod = DenseModule(cfg)

    batch, seq, hidden = 2, 8, cfg.hidden
    x = jax.random.normal(jax.random.PRNGKey(0), (batch, seq, hidden), jnp.float32)
    x2d = x.reshape(batch * seq, hidden)  # glue reshape outside the kernel

    y = mod.forward(x2d)
    y = jax.block_until_ready(y)

    # Correctness check against plain JAX reference (same bf16-rounded inputs,
    # f32 accumulate, f32 bias add).
    y_ref = (
        x2d.astype(jnp.bfloat16).astype(jnp.float32)
        @ mod.w.astype(jnp.float32)
        + mod.b
    )
    assert y.shape == (batch * seq, cfg.out)
    assert jnp.allclose(y, y_ref, atol=1e-2, rtol=1e-2)

    print("KERNEL_OK")
</pallas_src>

<mosaic_0001>
module attributes {stable_mosaic.version = 11 : i64} {
  func.func @_linear_kernel_single_k(%arg0: i32, %arg1: i32, %arg2: memref<16x128xbf16, #tpu.memory_space<vmem>>, %arg3: memref<128x128xbf16, #tpu.memory_space<vmem>>, %arg4: memref<1x128xf32, #tpu.memory_space<vmem>>, %arg5: memref<16x128xf32, #tpu.memory_space<vmem>>) attributes {dimension_semantics = [#tpu.dimension_semantics<parallel>, #tpu.dimension_semantics<parallel>], iteration_bounds = array<i64: 1, 1>, scalar_prefetch = 0 : i64, scratch_operands = 0 : i64, tpu.core_type = #tpu.core_type<tc>, window_params = [{transform_indices = @transform_0, window_bounds = array<i64: 16, 128>}, {transform_indices = @transform_1, window_bounds = array<i64: 128, 128>}, {transform_indices = @transform_2, window_bounds = array<i64: 1, 128>}, {transform_indices = @transform_3, window_bounds = array<i64: 16, 128>}]} {
    %c0 = arith.constant 0 : index
    %c0_0 = arith.constant 0 : index
    %0 = vector.load %arg2[%c0, %c0_0] : memref<16x128xbf16, #tpu.memory_space<vmem>>, vector<16x128xbf16>
    %c0_1 = arith.constant 0 : index
    %c0_2 = arith.constant 0 : index
    %1 = vector.load %arg3[%c0_1, %c0_2] : memref<128x128xbf16, #tpu.memory_space<vmem>>, vector<128x128xbf16>
    %cst = arith.constant dense<0.000000e+00> : vector<16x128xf32>
    %2 = tpu.matmul %0, %1, %cst {dimension_numbers = #tpu.dot_dimension_numbers<[1], [0], [0], [1], [0, 0, 1, 1], [], []>} : vector<16x128xbf16>, vector<128x128xbf16>, vector<16x128xf32> -> vector<16x128xf32>
    %c0_3 = arith.constant 0 : index
    %c0_4 = arith.constant 0 : index
    %3 = vector.load %arg4[%c0_3, %c0_4] : memref<1x128xf32, #tpu.memory_space<vmem>>, vector<1x128xf32>
    %4 = vector.broadcast %3 : vector<1x128xf32> to vector<16x128xf32>
    %5 = arith.addf %2, %4 : vector<16x128xf32>
    %c0_5 = arith.constant 0 : index
    %c0_6 = arith.constant 0 : index
    %6 = vector.load %arg5[%c0_5, %c0_6] : memref<16x128xf32, #tpu.memory_space<vmem>>, vector<16x128xf32>
    tpu.vector_store %arg5[%c0_5, %c0_6], %5 {strides = array<i32>} : memref<16x128xf32, #tpu.memory_space<vmem>>, vector<16x128xf32>,
    return
  }
  func.func @transform_0(%arg0: i32, %arg1: i32) -> (i32, i32) {
    %c0_i32 = arith.constant 0 : i32
    %c0_i32_0 = arith.constant 0 : i32
    return %arg0, %c0_i32 : i32, i32
  }
  func.func @transform_1(%arg0: i32, %arg1: i32) -> (i32, i32) {
    %c0_i32 = arith.constant 0 : i32
    %c0_i32_0 = arith.constant 0 : i32
    return %c0_i32, %arg1 : i32, i32
  }
  func.func @transform_2(%arg0: i32, %arg1: i32) -> (i32, i32) {
    %c0_i32 = arith.constant 0 : i32
    %c0_i32_0 = arith.constant 0 : i32
    return %c0_i32, %arg1 : i32, i32
  }
  func.func @transform_3(%arg0: i32, %arg1: i32) -> (i32, i32) {
    %c0_i32 = arith.constant 0 : i32
    return %arg0, %arg1 : i32, i32
  }
}

</mosaic_0001>

<llo_original>
// kernel: dense_forward.1
$region0: #{dense_forward.1}
  #allocation0 [shape = 'u32[]', space=smem, size = 0x4, offset = 0x4, fixed_abs, tag = 'smem constant byte address 0x4 - core index']
  #allocation1 [shape = 'u32[144,128]{1,0:T(1,128)}', space=vmem, size = 0x12000, scoped, tag = 'internal scratch']
  %s0 = inlined_call_operand.vmem [shape: bf16[16,128], index: 0, kind: input, shape index: {}]
  %s1 = inlined_call_operand.vmem [shape: bf16[128,128], index: 1, kind: input, shape index: {}]
  %s2 = inlined_call_operand.vmem [shape: f32[1,128], index: 2, kind: input, shape index: {}]
  %s3 = inlined_call_operand.hbm [shape: f32[16,128], index: 3, kind: output, shape index: {}]
  %s4 = sld [smem:[#allocation0]]
  $region22: #{dense_forward.1} parent=0
    _
  %s6 = ssub.s32 1, %s4
  %s7 = scalar_select 0, %s6, %s4
  $region1: #{dense_forward.1} parent=0
    #allocation2 [shape = 'u8[8192]{0}', space=vmem, size = 0x2000, scoped, tag = 'output window, operand 0, single buffered']
    #allocation3 [shape = 's32[1]{0}', space=sflag, size = 0x4, scoped, tag = 'scoped memory for dense_forward.1']
    %8 = vsyncpa [#allocation3], 0
    // Predicated region
    $region2: #{dense_forward.1} parent=1 // pred_check
      _
    $region3: #{dense_forward.1} parent=1 // pred_check_branch
      %10 = sbr.rel (0) target = $region5
    $region4: #{dense_forward.1} parent=1 // pred_region
      _
    $region5: #{dense_forward.1} parent=1 // pred_fallthru
      _
    // Predicated region
    $region6: #{dense_forward.1} parent=1 // pred_check
      _
    $region7: #{dense_forward.1} parent=1 // pred_check_branch
      %12 = sbr.rel (0) target = $region9
    $region8: #{dense_forward.1} parent=1 // pred_region
      _
    $region9: #{dense_forward.1} parent=1 // pred_fallthru
      _
    // Predicated region
    $region10: #{dense_forward.1} parent=1 // pred_check
      _
    $region11: #{dense_forward.1} parent=1 // pred_check_branch
      %14 = sbr.rel (0) target = $region13
    $region12: #{dense_forward.1} parent=1 // pred_region
      _
    $region13: #{dense_forward.1} parent=1 // pred_fallthru
      _
    %v16 = vld [vmem:[%s0] sm:$0xf]
    %v17 = vld [vmem:[%s0 + $0x4] sm:$0xf]
    %v18 = vld [vmem:[%s1] sm:$0xf]
    %v19 = vld [vmem:[%s1 + $0x4] sm:$0xf]
    %v20 = vld [vmem:[%s1 + $0x8] sm:$0xf]
    %v21 = vld [vmem:[%s1 + $0xc] sm:$0xf]
    %v22 = vld [vmem:[%s1 + $0x10] sm:$0xf]
    %v23 = vld [vmem:[%s1 + $0x14] sm:$0xf]
    %v24 = vld [vmem:[%s1 + $0x18] sm:$0xf]
    %v25 = vld [vmem:[%s1 + $0x1c] sm:$0xf]
    %v26 = vld [vmem:[%s1 + $0x20] sm:$0xf]
    %v27 = vld [vmem:[%s1 + $0x24] sm:$0xf]
    %v28 = vld [vmem:[%s1 + $0x28] sm:$0xf]
    %v29 = vld [vmem:[%s1 + $0x2c] sm:$0xf]
    %v30 = vld [vmem:[%s1 + $0x30] sm:$0xf]
    %v31 = vld [vmem:[%s1 + $0x34] sm:$0xf]
    %v32 = vld [vmem:[%s1 + $0x38] sm:$0xf]
    %v33 = vld [vmem:[%s1 + $0x3c] sm:$0xf]
    %v34 = vld [vmem:[%s2] sm:$0x1]
    %v36 = vlaneseq
    %v37 = vshrl.u32 %v36, 7
    %v38 = vsub.s32 0, %v37
    %v39 = vrot.slane %v34, %v38
    %v43 = vunpack.c.l.b16 %v16
    %v44 = vunpack.c.l.b16 %v17
    %v45 = vpack.c.b16 %v44, %v43
    %v63 = vunpack.c.l.b16 %v18
    %v64 = vunpack.c.l.b16 %v19
    %v65 = vunpack.c.l.b16 %v20
    %v66 = vunpack.c.l.b16 %v21
    %v67 = vunpack.c.l.b16 %v22
    %v68 = vunpack.c.l.b16 %v23
    %v69 = vunpack.c.l.b16 %v24
    %v70 = vunpack.c.l.b16 %v25
    %v71 = vunpack.c.l.b16 %v26
    %v72 = vunpack.c.l.b16 %v27
    %v73 = vunpack.c.l.b16 %v28
    %v74 = vunpack.c.l.b16 %v29
    %v75 = vunpack.c.l.b16 %v30
    %v76 = vunpack.c.l.b16 %v31
    %v77 = vunpack.c.l.b16 %v32
    %v78 = vunpack.c.l.b16 %v33
    %v79 = vpack.c.b16 %v64, %v63
    %v80 = vpack.c.b16 %v66, %v65
    %v81 = vpack.c.b16 %v68, %v67
    %v82 = vpack.c.b16 %v70, %v69
    %v83 = vpack.c.b16 %v72, %v71
    %v84 = vpack.c.b16 %v74, %v73
    %v85 = vpack.c.b16 %v76, %v75
    %v86 = vpack.c.b16 %v78, %v77
    %95 = vmatprep.subr.bf16.mxu0 0
    %96 = vmatpush1.bf16.msra.mxu0 %v79
    %97 = vmatprep.subr.bf16.mxu0 0
    %98 = vmatpush1.bf16.msra.mxu0 %v80
    %99 = vmatprep.subr.bf16.mxu0 0
    %100 = vmatpush1.bf16.msra.mxu0 %v81
    %101 = vmatprep.subr.bf16.mxu0 0
    %102 = vmatpush1.bf16.msra.mxu0 %v82
    %103 = vmatprep.subr.bf16.mxu0 0
    %104 = vmatpush1.bf16.msra.mxu0 %v83
    %105 = vmatprep.subr.bf16.mxu0 0
    %106 = vmatpush1.bf16.msra.mxu0 %v84
    %107 = vmatprep.subr.bf16.mxu0 0
    %108 = vmatpush1.bf16.msra.mxu0 %v85
    %109 = vmatprep.subr.bf16.mxu0 0
    %110 = vmatpush1.bf16.msra.mxu0 %v86
    %111 = vmatprep.subr.bf16.mxu0 0
    %112 = vmatpush1.bf16.msra.mxu0 0
    %113 = vmatprep.subr.bf16.mxu0 0
    %114 = vmatpush1.bf16.msra.mxu0 0
    %115 = vmatprep.subr.bf16.mxu0 0
    %116 = vmatpush1.bf16.msra.mxu0 0
    %117 = vmatprep.subr.bf16.mxu0 0
    %118 = vmatpush1.bf16.msra.mxu0 0
    %119 = vmatprep.subr.bf16.mxu0 0
    %120 = vmatpush1.bf16.msra.mxu0 0
    %121 = vmatprep.subr.bf16.mxu0 0
    %122 = vmatpush1.bf16.msra.mxu0 0
    %123 = vmatprep.subr.bf16.mxu0 0
    %124 = vmatpush1.bf16.msra.mxu0 0
    %125 = vmatprep.subr.bf16.mxu0 0
    %126 = vmatpush1.bf16.msra.mxu0 0
    %127 = vmatprep.mubr.bf16.mxu0 0
    %128 = vmatmul.mubr.bf16.gmra.mrb[0].mxu0 %v45
    %v129 = vpop.f32.mrb[0].mxu0
    %v130 = vadd.f32 %v39, %v129
    %v131 = vpop.f32.mrb[0].mxu0
    %v132 = vpop.f32.mrb[0].mxu0
    %v133 = vadd.f32 %v39, %v132
    %v134 = vpop.f32.mrb[0].mxu0
    %135 = vdwg.mxu0
    %136 = vst [vmem:[#allocation2] sm:$0xff] %v130
    %137 = vst [vmem:[#allocation2 + $0x8] sm:$0xff] %v133
    // Predicated region
    $region14: #{dense_forward.1} parent=1 // pred_check
      _
    $region15: #{dense_forward.1} parent=1 // pred_check_branch
      %139 = sbr.rel (0) target = $region17
    $region16: #{dense_forward.1} parent=1 // pred_region
      %s141 = ssub.s32 256, 256
      %142 = vsyncadd [#allocation3], %s141
      %s143 = sshll.u32 [#allocation2], 4
      %s144 = int_to_ptr.vmem [resolvable:$true] %s143
      %149 = dma.vmem_to_hbm [thread:$0]  %s144, 256, %s3, [#allocation3], 128, 128, 8
    $region17: #{dense_forward.1} parent=1 // pred_fallthru
      _
    // Predicated region
    $region18: #{dense_forward.1} parent=1 // pred_check
      _
    $region19: #{dense_forward.1} parent=1 // pred_check_branch
      %151 = sbr.rel (0) target = $region21
    $region20: #{dense_forward.1} parent=1 // pred_region
      %152 = dma.done [#allocation3], 256
    $region21: #{dense_forward.1} parent=1 // pred_fallthru
      _
    %153 = vsyncpa [#allocation3], 1

</llo_original>
